<compile_context>
chip_gen: v7x
topology: tpu7x:2x2x1
jax: 0.10.0
libtpu: 0.0.40
codegen_flags: <defaults>
</compile_context>

<pallas_src>
import functools
import math

import numpy as np

import jax
import jax.numpy as jnp
from jax.experimental import pallas as pl
from jax.experimental.pallas import tpu as pltpu


def get_padding(kernel_size, dilation=1):
    """Padding for which a 1D convolution preserves the input length (PyTorch ref)."""
    return int((kernel_size * dilation - dilation) / 2)


def _round_up(x, m):
    return ((x + m - 1) // m) * m


def _cdiv(a, b):
    return -(-a // b)


# ------------------------------------------------------------------------------------
# generation-aware tiling configuration (v7x: 64 MiB VMEM per TC, v5e/v6e: 128 MiB)
# ------------------------------------------------------------------------------------
def _detect_vmem_bytes():
    try:
        info = pltpu.get_tpu_info()
        for name in ("vmem_capacity_bytes", "vmem_size_bytes", "vmem_bytes"):
            v = getattr(info, name, None)
            if v is not None and int(v) > 0:
                return int(v)
    except Exception:
        pass
    return None


_VMEM_PHYS = _detect_vmem_bytes()
if _VMEM_PHYS is not None and _VMEM_PHYS <= 80 * 1024 * 1024:      # v7x-class TensorCore
    _VMEM_LIMIT = 40 * 1024 * 1024
    _TILE_BYTES = 1 << 19            # ~512 KiB of bf16 activation per input block
elif _VMEM_PHYS is not None:                                       # v5e / v6e (128 MiB)
    _VMEM_LIMIT = 96 * 1024 * 1024
    _TILE_BYTES = 3 << 19            # bigger tiles amortize per-grid-step overhead
else:                                                              # unknown: conservative
    _VMEM_LIMIT = 48 * 1024 * 1024
    _TILE_BYTES = 1 << 19


def _choose_tile(n_rows, bytes_per_row, multiple):
    """Rows per kernel step: big enough to amortize the ~0.35us/step overhead, small
    enough that double-buffered blocks stay well inside the per-core VMEM budget."""
    m = max(8, int(multiple))
    target = max(m, _TILE_BYTES // max(1, bytes_per_row))
    target = min(target, 1 << 15)
    return _round_up(min(target, max(n_rows, 1)), m)


# ------------------------------------------------------------------------------------
# probe: can grid-invariant blocks be single-buffered?
# ------------------------------------------------------------------------------------
def _probe_single_buffering():
    try:
        def _k(x_ref, o_ref):
            o_ref[...] = x_ref[...] + 1.0

        out = pl.pallas_call(
            _k,
            out_shape=jax.ShapeDtypeStruct((16, 128), jnp.float32),
            grid=(2,),
            in_specs=[pl.BlockSpec((8, 128), lambda i: (0, 0),
                                   pipeline_mode=pl.Buffered(1))],
            out_specs=pl.BlockSpec((8, 128), lambda i: (i, 0)),
        )(jnp.zeros((8, 128), jnp.float32))
        jax.block_until_ready(out)
        return True
    except Exception:
        return False


_SINGLE_BUFFER_OK = _probe_single_buffering()


# ------------------------------------------------------------------------------------
# Pallas kernel: fused (leaky_relu ->) conv (-> + residual/accum) (-> tanh) (-> mask)
# ------------------------------------------------------------------------------------
def _conv_kernel(x_ref, w_ref, b_ref, *rest, K, dil, TT, cin_tap, slope, tanh_out,
                 n_add, need_mask, out_groups, group_cols, out_valid):
    # x_ref : (1, 1, TT + halo, cin_tap)   halo'd input tile (bf16)
    # w_ref : (K * cin_tap, cols)          tap-major weights (bf16), VMEM-resident
    # b_ref : (1, cols)                    bias (f32)
    # rest  : n_add tensors of (1, 1, TT, cols) added to the output, then the output ref
    add_refs = rest[:n_add]
    o_ref = rest[n_add]

    x = x_ref[0, 0]                                       # (TT + halo, cin_tap)
    if slope is not None:
        # fused leaky_relu; lrelu(0) == 0, so the zero padding stays exact
        x = jnp.where(x >= 0, x, x * slope)

    w = w_ref[...]
    if K == 1:
        acc = jnp.dot(x[:TT, :], w, preferred_element_type=jnp.float32)
    elif cin_tap >= 128:
        # contraction already lane-dense: K accumulating MXU pushes, no concat copy
        acc = jnp.dot(x[0:TT, :], w[0:cin_tap, :], preferred_element_type=jnp.float32)
        for k in range(1, K):
            acc = acc + jnp.dot(x[k * dil:k * dil + TT, :],
                                w[k * cin_tap:(k + 1) * cin_tap, :],
                                preferred_element_type=jnp.float32)
    else:
        # small per-tap channel count: fold the K taps into one wide contraction
        xk = jnp.concatenate([x[k * dil:k * dil + TT, :] for k in range(K)], axis=-1)
        acc = jnp.dot(xk, w, preferred_element_type=jnp.float32)

    acc = acc + b_ref[...]
    for a in add_refs:                                    # residual / xs accumulation
        acc = acc + a[0, 0].astype(jnp.float32)
    if tanh_out:
        acc = jnp.tanh(acc)

    if need_mask:
        # zero everything past the true signal length so folded layouts stay exact
        rows = jax.lax.broadcasted_iota(jnp.int32, acc.shape, 0)
        t = pl.program_id(0) * TT + rows
        if out_groups == 1:
            tidx = t
        else:
            cols = jax.lax.broadcasted_iota(jnp.int32, acc.shape, 1)
            tidx = t * out_groups + (cols if group_cols == 1 else cols // group_cols)
        acc = jnp.where(tidx < out_valid, acc, 0.0)

    o_ref[0, 0] = acc.astype(o_ref.dtype)


@functools.partial(
    jax.jit,
    static_argnames=("K", "dilation", "pad_left", "tile_rows", "n_tiles", "valid_len",
                     "lrelu_slope", "tanh", "out_dtype", "out_groups", "out_valid"))
def fused_conv1d(x, w2d, bias, adds, *, K, dilation, pad_left, tile_rows, n_tiles,
                 valid_len, lrelu_slope, tanh, out_dtype, out_groups, out_valid):
    """Generic fused conv over the time axis.  x: (B, L, Cin), valid data in
    x[:, :valid_len].  Returns (B, n_tiles, tile_rows, cols); every entry past
    `out_valid` time steps (row covers `out_groups` steps) is exactly zero."""
    B, _, Cin = x.shape
    cols = w2d.shape[1]
    assert cols % out_groups == 0
    TT = tile_rows
    halo = (K - 1) * dilation

    # ---- halo'd time tiles in ONE fused XLA pass ----
    # TODO(synk): replace with an in-kernel manual-DMA halo (memory_space=pl.ANY).
    n_slab = max(_cdiv(halo, TT) if halo else 0,
                 _cdiv(max(0, pad_left + valid_len - n_tiles * TT), TT))
    Lp = (n_tiles + n_slab) * TT
    xp = jnp.pad(x[:, :valid_len, :],
                 ((0, 0), (pad_left, Lp - pad_left - valid_len), (0, 0)))
    slabs = [xp[:, :n_tiles * TT, :].reshape(B, n_tiles, TT, Cin)]
    for u in range(1, n_slab + 1):
        width = min(TT, halo - (u - 1) * TT)
        if width <= 0:
            break
        slabs.append(xp[:, u * TT:(u + n_tiles) * TT, :]
                     .reshape(B, n_tiles, TT, Cin)[:, :, :width, :])
    xt = slabs[0] if len(slabs) == 1 else jnp.concatenate(slabs, axis=2)
    halo_rows = xt.shape[2] - TT          # == halo

    kernel = functools.partial(
        _conv_kernel, K=K, dil=dilation, TT=TT, cin_tap=Cin, slope=lrelu_slope,
        tanh_out=tanh, n_add=len(adds),
        need_mask=(n_tiles * TT * out_groups > out_valid),
        out_groups=out_groups, group_cols=cols // out_groups, out_valid=out_valid)

    res_mode = {"pipeline_mode": pl.Buffered(1)} if _SINGLE_BUFFER_OK else {}
    in_specs = [
        pl.BlockSpec((1, 1, TT + halo_rows, Cin), lambda t, b: (b, t, 0, 0)),
        # grid-invariant weight / bias: a single resident VMEM copy (no double buffer)
        pl.BlockSpec((K * Cin, cols), lambda t, b: (0, 0), **res_mode),
        pl.BlockSpec((1, cols), lambda t, b: (0, 0), **res_mode),
    ]
    in_specs += [pl.BlockSpec((1, 1, TT, cols), lambda t, b: (b, t, 0, 0)) for _ in adds]

    return pl.pallas_call(
        kernel,
        out_shape=jax.ShapeDtypeStruct((B, n_tiles, TT, cols), out_dtype),
        grid=(n_tiles, B),           # time tiles lead: megacore shards them even at B=1
        in_specs=in_specs,
        out_specs=pl.BlockSpec((1, 1, TT, cols), lambda t, b: (b, t, 0, 0)),
        compiler_params=pltpu.CompilerParams(
            dimension_semantics=("parallel", "parallel"),
            vmem_limit_bytes=_VMEM_LIMIT),
    )(xt, w2d, bias, *adds)


def _flat(x_tiled):
    B, n_t, TT, C = x_tiled.shape
    return x_tiled.reshape(B, n_t * TT, C)


# ------------------------------------------------------------------------------------
# parameter initialization + weight repacking (PyTorch layouts -> kernel layouts)
# ------------------------------------------------------------------------------------
def _uniform(key, shape, scale):
    return jax.random.uniform(key, shape, jnp.float32, -scale, scale)


def _conv_weights(key, cin, cout, k):
    kw, kb = jax.random.split(key)
    s = 1.0 / math.sqrt(cin * k)
    return _uniform(kw, (cout, cin, k), s), _uniform(kb, (cout,), s)


def _convT_weights(key, cin, cout, k):
    kw, kb = jax.random.split(key)
    s = 1.0 / math.sqrt(cin * k)
    return _uniform(kw, (cin, cout, k), s), _uniform(kb, (cout,), s)


def _pack_conv(w_oik, bias, scale=1.0):
    """(Cout, Cin, K) torch Conv1d layout -> ((K*Cin, Cout) bf16, (1, Cout) f32)."""
    w = np.asarray(w_oik, np.float32) * scale
    Cout, Cin, K = w.shape
    w2 = np.transpose(w, (2, 1, 0)).reshape(K * Cin, Cout)
    b2 = np.asarray(bias, np.float32).reshape(1, Cout)
    return jnp.asarray(w2, jnp.bfloat16), jnp.asarray(b2, jnp.float32)


def _pack_conv_transpose(w_iok, bias, stride, padding, scale=1.0):
    """Polyphase repack of torch ConvTranspose1d (Cin, Cout, K).

    y[m*s + q, co] = b[co] + sum_a sum_ci x[m - a, ci] * w[ci, co, a*s + q + padding],
    so a regular conv with K_eff taps whose output column (q*Cout + co) holds phase q;
    flattening (rows, s*Cout) row-major interleaves the phases for free.
    """
    w = np.asarray(w_iok, np.float32)
    b = np.asarray(bias, np.float32)
    Cin, Cout, K = w.shape
    s = stride
    a_lo = min(-((q + padding) // s) for q in range(s))
    a_hi = max((K - 1 - q - padding) // s for q in range(s))
    assert a_hi >= 0 and a_lo <= 0
    K_eff = a_hi - a_lo + 1
    W = np.zeros((K_eff, Cin, s, Cout), np.float32)
    for t in range(K_eff):
        a = a_hi - t
        for q in range(s):
            k = a * s + q + padding
            if 0 <= k < K:
                W[t, :, q, :] = w[:, :, k]
    W = (W * scale).reshape(K_eff * Cin, s * Cout)
    bb = np.tile(b, s).reshape(1, s * Cout)
    return (jnp.asarray(W, jnp.bfloat16), jnp.asarray(bb, jnp.float32), K_eff, a_hi)


def _pack_conv_folded(w_oik, bias, r, dilation, scale=1.0):
    """Block-Toeplitz repack of a stride-1 Conv1d so each matmul row produces r
    consecutive time steps (lane-dense activations when r*Cout ~ 128)."""
    w = np.asarray(w_oik, np.float32)
    b = np.asarray(bias, np.float32)
    Cout, Cin, K = w.shape
    p = get_padding(K, dilation)
    offs = [q - p + k * dilation for q in range(r) for k in range(K)]
    t_min = min(o // r for o in offs)
    t_max = max(o // r for o in offs)
    K_fold = t_max - t_min + 1
    Wf = np.zeros((K_fold, r, Cin, r, Cout), np.float32)
    for q in range(r):
        for k in range(K):
            o = q - p + k * dilation
            t = o // r
            qi = o - t * r
            Wf[t - t_min, qi, :, q, :] += w[:, :, k].T * scale
    Wf = Wf.reshape(K_fold * r * Cin, r * Cout)
    bf = np.tile(b, r).reshape(1, r * Cout)
    return (jnp.asarray(Wf, jnp.bfloat16), jnp.asarray(bf, jnp.float32), K_fold, -t_min)


def _fold_factor(ch):
    return max(1, 128 // ch) if ch < 128 else 1


def _post_fold(ch):
    r = 128
    while r > 8 and r * ch > 8192:
        r //= 2
    return r


def _pack_resblock_conv(w, b, ks, d, r):
    if r > 1:
        wf, bf, K_fold, pad = _pack_conv_folded(w, b, r, d)
        return dict(w=wf, b=bf, K=K_fold, dil=1, pad=pad)
    wf, bf = _pack_conv(w, b)
    return dict(w=wf, b=bf, K=ks, dil=d, pad=get_padding(ks, d))


def init_hifigan(key, cfg):
    keys = iter(jax.random.split(key, 4096))
    C0 = cfg["upsample_initial_channel"]
    nk = len(cfg["resblock_kernel_sizes"])
    inv_nk = 1.0 / nk

    params, raw = {}, {}
    w, b = _conv_weights(next(keys), cfg["in_channels"], C0, 7)
    raw["conv_pre"] = (w, b)
    params["conv_pre"] = _pack_conv(w, b)

    params["ups"], raw["ups"] = [], []
    params["resblocks"], raw["resblocks"] = [], []
    ch = C0
    for i, (u, k) in enumerate(zip(cfg["upsample_rates"], cfg["upsample_kernel_sizes"])):
        cin = C0 // 2 ** i
        ch = C0 // 2 ** (i + 1)
        p = (k - u) // 2
        wT, bT = _convT_weights(next(keys), cin, ch, k)
        raw["ups"].append((wT, bT))
        # fold the previous stage's /num_kernels into this layer's weights (exact:
        # leaky_relu is positively homogeneous and the bias is left unscaled).
        w_big, b_big, k_eff, pad_left = _pack_conv_transpose(
            wT, bT, u, p, scale=(inv_nk if i > 0 else 1.0))
        r = _fold_factor(ch)
        params["ups"].append(dict(w=w_big, b=b_big, k_eff=k_eff, pad_left=pad_left,
                                  stride=u, kernel=k, padding=p, ch_out=ch, fold=r))
        for ks, dils in zip(cfg["resblock_kernel_sizes"], cfg["resblock_dilation_sizes"]):
            if cfg["resblock_type"] == 1:
                convs1, convs2, raw1, raw2 = [], [], [], []
                for d in dils:
                    w1, b1 = _conv_weights(next(keys), ch, ch, ks)
                    raw1.append(((w1, b1), ks, d))
                    convs1.append(_pack_resblock_conv(w1, b1, ks, d, r))
                    w2, b2 = _conv_weights(next(keys), ch, ch, ks)
                    raw2.append(((w2, b2), ks, 1))
                    convs2.append(_pack_resblock_conv(w2, b2, ks, 1, r))
                params["resblocks"].append({"convs1": convs1, "convs2": convs2})
                raw["resblocks"].append({"convs1": raw1, "convs2": raw2})
            else:
                convs, rawc = [], []
                for d in dils:
                    wc, bc = _conv_weights(next(keys), ch, ch, ks)
                    rawc.append(((wc, bc), ks, d))
                    convs.append(_pack_resblock_conv(wc, bc, ks, d, r))
                params["resblocks"].append({"convs": convs})
                raw["resblocks"].append({"convs": rawc})

    rp = _post_fold(ch)
    w, b = _conv_weights(next(keys), ch, 1, 7)
    raw["conv_post"] = (w, b)
    wpf, bpf, kpf, ppf = _pack_conv_folded(w, b, rp, 1, scale=inv_nk)
    params["conv_post"] = dict(w=wpf, b=bpf, K=kpf, pad=ppf, fold=rp)
    return params, raw


# ------------------------------------------------------------------------------------
# forward pass (matches HiFiGANVocoder.forward semantics)
# ------------------------------------------------------------------------------------
def _resblock(xf, valid_t, valid_f, r, rb, cfg, TTf, n_t, xs):
    """One residual block in (optionally folded) layout; the running cross-block sum
    `xs` is fused into its last conv."""
    slope = cfg["lrelu_slope"]

    def conv(inp, cp, adds):
        return fused_conv1d(_flat(inp), cp["w"], cp["b"], tuple(adds),
                            K=cp["K"], dilation=cp["dil"], pad_left=cp["pad"],
                            tile_rows=TTf, n_tiles=n_t, valid_len=valid_f,
                            lrelu_slope=slope, tanh=False, out_dtype=jnp.bfloat16,
                            out_groups=r, out_valid=valid_t)

    if cfg["resblock_type"] == 1:
        cur = xf
        n = len(rb["convs1"])
        for idx, (c1, c2) in enumerate(zip(rb["convs1"], rb["convs2"])):
            xt = conv(cur, c1, adds=())
            last = idx == n - 1
            adds = [cur] + ([xs] if (last and xs is not None) else [])
            cur = conv(xt, c2, adds=adds)           # conv + residual (+ xs)
        return cur
    else:
        cur = xf
        n = len(rb["convs"])
        for idx, c in enumerate(rb["convs"]):
            last = idx == n - 1
            adds = [cur] + ([xs] if (last and xs is not None) else [])
            cur = conv(cur, c, adds=adds)
        return cur


def hifigan_forward(params, x_bct, cfg):
    slope = cfg["lrelu_slope"]
    nk = len(cfg["resblock_kernel_sizes"])
    B, _, T = x_bct.shape
    C0 = cfg["upsample_initial_channel"]
    rp = params["conv_post"]["fold"]

    # NCW -> NWC so channels map onto lanes; bf16 halves HBM traffic / VMEM footprint.
    x = jnp.transpose(x_bct, (0, 2, 1)).astype(jnp.bfloat16)

    w_pre, b_pre = params["conv_pre"]
    TT = _choose_tile(T, 2 * C0, 8)
    n_t = _cdiv(T, TT)
    x = fused_conv1d(x, w_pre, b_pre, (),
                     K=7, dilation=1, pad_left=3, tile_rows=TT, n_tiles=n_t,
                     valid_len=T, lrelu_slope=None, tanh=False,
                     out_dtype=jnp.bfloat16, out_groups=1, out_valid=T)
    valid = T
    ch = C0

    for i, up in enumerate(params["ups"]):
        s, k, p = up["stride"], up["kernel"], up["padding"]
        ch = up["ch_out"]
        r = up["fold"]
        out_len = (valid - 1) * s - 2 * p + k
        is_last = i == len(params["ups"]) - 1
        mult = math.lcm(8 * r, 8 * s, rp if is_last else 1)
        TT = _choose_tile(out_len, 2 * ch, mult)
        n_t = _cdiv(out_len, TT)
        tb = TT // s

        # polyphase transposed conv: all `s` output phases of a time row come out of one
        # matmul; the preceding leaky_relu and the previous stage's /num_kernels (i > 0)
        # are fused in.
        x = fused_conv1d(_flat(x), up["w"], up["b"], (),
                         K=up["k_eff"], dilation=1, pad_left=up["pad_left"],
                         tile_rows=tb, n_tiles=n_t, valid_len=valid,
                         lrelu_slope=slope, tanh=False, out_dtype=jnp.bfloat16,
                         out_groups=s, out_valid=out_len)
        # (B, n_t, tb, s*ch) row-major == (B, n_t, TT, ch): free phase interleave.
        x = x.reshape(B, n_t, TT, ch)
        valid = out_len

        # fold r consecutive time steps onto the lane axis for the resblocks.
        TTf = TT // r
        xf = x.reshape(B, n_t, TTf, r * ch)
        valid_f = _cdiv(valid, r)

        xs = None
        for j in range(nk):
            xs = _resblock(xf, valid, valid_f, r, params["resblocks"][i * nk + j],
                           cfg, TTf, n_t, xs)
        # NOTE: the /num_kernels average is folded into the next layer's weights.
        x = xs.reshape(B, n_t, TT, ch)

    # conv_post folded by rp time steps: lane-dense f32 output, MXU N dim = rp (not 1).
    cp = params["conv_post"]
    L = n_t * TT
    xp = _flat(x).reshape(B, L // rp, rp * ch)
    valid_p = _cdiv(valid, rp)
    TTp = _choose_tile(valid_p, 2 * rp * ch, 8)
    n_tp = _cdiv(valid_p, TTp)
    y = fused_conv1d(xp, cp["w"], cp["b"], (),
                     K=cp["K"], dilation=1, pad_left=cp["pad"],
                     tile_rows=TTp, n_tiles=n_tp, valid_len=valid_p,
                     lrelu_slope=0.01, tanh=True, out_dtype=jnp.float32,
                     out_groups=rp, out_valid=valid)
    y = y.reshape(B, n_tp * TTp * rp)[:, :valid]
    return y[:, None, :]                       # (B, 1, T * prod(upsample_rates))


# ------------------------------------------------------------------------------------
# plain-JAX float32 reference (validates the polyphase / block-Toeplitz repacking)
# ------------------------------------------------------------------------------------
def _ref_forward(raw, x, cfg):
    slope = cfg["lrelu_slope"]
    nk = len(cfg["resblock_kernel_sizes"])
    hi = jax.lax.Precision.HIGHEST

    def conv(v, wb, dilation=1, padding=0):
        w, b = wb
        y = jax.lax.conv_general_dilated(
            v, w, window_strides=(1,), padding=[(padding, padding)],
            rhs_dilation=(dilation,), dimension_numbers=("NCH", "OIH", "NCH"),
            precision=hi)
        return y + b[None, :, None]

    def convT(v, wb, stride, padding):
        w, b = wb
        K = w.shape[2]
        w2 = jnp.flip(jnp.transpose(w, (1, 0, 2)), axis=2)
        y = jax.lax.conv_general_dilated(
            v, w2, window_strides=(1,), padding=[(K - 1 - padding, K - 1 - padding)],
            lhs_dilation=(stride,), dimension_numbers=("NCH", "OIH", "NCH"),
            precision=hi)
        return y + b[None, :, None]

    def lrelu(v, s):
        return jnp.where(v >= 0, v, v * s)

    x = conv(x, raw["conv_pre"], padding=3)
    for i, (u, kk) in enumerate(zip(cfg["upsample_rates"], cfg["upsample_kernel_sizes"])):
        x = lrelu(x, slope)
        x = convT(x, raw["ups"][i], u, (kk - u) // 2)
        xs = jnp.zeros_like(x)
        for j in range(nk):
            rb = raw["resblocks"][i * nk + j]
            xr = x
            if cfg["resblock_type"] == 1:
                for (wb1, k1, d1), (wb2, k2, d2) in zip(rb["convs1"], rb["convs2"]):
                    xt = lrelu(xr, slope)
                    xt = conv(xt, wb1, dilation=d1, padding=get_padding(k1, d1))
                    xt = lrelu(xt, slope)
                    xt = conv(xt, wb2, dilation=d2, padding=get_padding(k2, d2))
                    xr = xt + xr
            else:
                for (wb, kks, d) in rb["convs"]:
                    xt = lrelu(xr, slope)
                    xt = conv(xt, wb, dilation=d, padding=get_padding(kks, d))
                    xr = xt + xr
            xs = xs + xr
        x = xs / nk
    x = lrelu(x, 0.01)
    x = conv(x, raw["conv_post"], padding=3)
    return jnp.tanh(x)


if __name__ == "__main__":
    cfg = dict(
        in_channels=8,
        upsample_rates=(2, 2),
        upsample_initial_channel=32,
        upsample_kernel_sizes=(4, 4),
        resblock_kernel_sizes=(3, 5),
        resblock_dilation_sizes=((1, 3, 5), (1, 3, 5)),
        resblock_type=1,
        lrelu_slope=0.1,
    )
    key = jax.random.PRNGKey(0)
    kp, kx = jax.random.split(key)
    params, raw = init_hifigan(kp, cfg)

    B, T = 2, 16
    x = jax.random.normal(kx, (B, cfg["in_channels"], T), jnp.float32)

    y = hifigan_forward(params, x, cfg)
    y = jax.block_until_ready(y)

    up_total = 1
    for u in cfg["upsample_rates"]:
        up_total *= u
    assert y.shape == (B, 1, T * up_total), y.shape
    assert bool(jnp.all(jnp.isfinite(y)))

    # validate polyphase/block-Toeplitz repacking against a plain-JAX f32 reference
    # (bf16 activations/weights end-to-end -> loose absolute tolerance).
    y_ref = _ref_forward(raw, x, cfg)
    err = float(jnp.max(jnp.abs(y.astype(jnp.float32) - y_ref)))
    assert err < 5e-2, f"max abs error vs reference: {err}"
    print("KERNEL_OK")
</pallas_src>

<mosaic_0001>
module attributes {stable_mosaic.version = 11 : i64} {
  func.func @_k(%arg0: i32, %arg1: memref<8x128xf32, #tpu.memory_space<vmem>>, %arg2: memref<8x128xf32, #tpu.memory_space<vmem>>) attributes {dimension_semantics = [#tpu.dimension_semantics<arbitrary>], iteration_bounds = array<i64: 2>, scalar_prefetch = 0 : i64, scratch_operands = 0 : i64, tpu.core_type = #tpu.core_type<tc>, window_params = [{pipeline_mode = #tpu.pipeline_mode<synchronous>, transform_indices = @transform_0, window_bounds = array<i64: 8, 128>}, {transform_indices = @transform_1, window_bounds = array<i64: 8, 128>}]} {
    %c0 = arith.constant 0 : index
    %c0_0 = arith.constant 0 : index
    %0 = vector.load %arg1[%c0, %c0_0] : memref<8x128xf32, #tpu.memory_space<vmem>>, vector<8x128xf32>
    %cst = arith.constant 1.000000e+00 : f32
    %1 = vector.broadcast %cst : f32 to vector<8x128xf32>
    %2 = arith.addf %0, %1 : vector<8x128xf32>
    %c0_1 = arith.constant 0 : index
    %c0_2 = arith.constant 0 : index
    %3 = vector.load %arg2[%c0_1, %c0_2] : memref<8x128xf32, #tpu.memory_space<vmem>>, vector<8x128xf32>
    tpu.vector_store %arg2[%c0_1, %c0_2], %2 {strides = array<i32>} : memref<8x128xf32, #tpu.memory_space<vmem>>, vector<8x128xf32>,
    return
  }
  func.func @transform_0(%arg0: i32) -> (i32, i32) {
    %c0_i32 = arith.constant 0 : i32
    %c0_i32_0 = arith.constant 0 : i32
    %c0_i32_1 = arith.constant 0 : i32
    return %c0_i32, %c0_i32_0 : i32, i32
  }
  func.func @transform_1(%arg0: i32) -> (i32, i32) {
    %c0_i32 = arith.constant 0 : i32
    %c0_i32_0 = arith.constant 0 : i32
    return %arg0, %c0_i32 : i32, i32
  }
}

module attributes {stable_mosaic.version = 11 : i64} {
  func.func @_conv_kernel(%arg0: i32, %arg1: i32, %arg2: memref<1x1x22x8xbf16, #tpu.memory_space<vmem>>, %arg3: memref<56x32xbf16, #tpu.memory_space<vmem>>, %arg4: memref<1x32xf32, #tpu.memory_space<vmem>>, %arg5: memref<1x1x16x32xbf16, #tpu.memory_space<vmem>>) attributes {dimension_semantics = [#tpu.dimension_semantics<parallel>, #tpu.dimension_semantics<parallel>], iteration_bounds = array<i64: 1, 2>, scalar_prefetch = 0 : i64, scratch_operands = 0 : i64, tpu.core_type = #tpu.core_type<tc>, window_params = [{transform_indices = @transform_0, window_bounds = array<i64: 1, 1, 22, 8>}, {pipeline_mode = #tpu.pipeline_mode<synchronous>, transform_indices = @transform_1, window_bounds = array<i64: 56, 32>}, {pipeline_mode = #tpu.pipeline_mode<synchronous>, transform_indices = @transform_2, window_bounds = array<i64: 1, 32>}, {transform_indices = @transform_3, window_bounds = array<i64: 1, 1, 16, 32>}]} {
    %c0 = arith.constant 0 : index
    %c0_0 = arith.constant 0 : index
    %c0_1 = arith.constant 0 : index
    %c0_2 = arith.constant 0 : index
    %0 = vector.load %arg2[%c0, %c0_0, %c0_1, %c0_2] : memref<1x1x22x8xbf16, #tpu.memory_space<vmem>>, vector<1x1x22x8xbf16>
    %1 = vector.shape_cast %0 : vector<1x1x22x8xbf16> to vector<22x8xbf16>
    %c0_3 = arith.constant 0 : index
    %c0_4 = arith.constant 0 : index
    %2 = vector.load %arg3[%c0_3, %c0_4] : memref<56x32xbf16, #tpu.memory_space<vmem>>, vector<56x32xbf16>
    %3 = vector.extract_strided_slice %1 {offsets = [0, 0], sizes = [16, 8], strides = [1, 1]} : vector<22x8xbf16> to vector<16x8xbf16>
    %4 = vector.extract_strided_slice %1 {offsets = [1, 0], sizes = [16, 8], strides = [1, 1]} : vector<22x8xbf16> to vector<16x8xbf16>
    %5 = vector.extract_strided_slice %1 {offsets = [2, 0], sizes = [16, 8], strides = [1, 1]} : vector<22x8xbf16> to vector<16x8xbf16>
    %6 = vector.extract_strided_slice %1 {offsets = [3, 0], sizes = [16, 8], strides = [1, 1]} : vector<22x8xbf16> to vector<16x8xbf16>
    %7 = vector.extract_strided_slice %1 {offsets = [4, 0], sizes = [16, 8], strides = [1, 1]} : vector<22x8xbf16> to vector<16x8xbf16>
    %8 = vector.extract_strided_slice %1 {offsets = [5, 0], sizes = [16, 8], strides = [1, 1]} : vector<22x8xbf16> to vector<16x8xbf16>
    %9 = vector.extract_strided_slice %1 {offsets = [6, 0], sizes = [16, 8], strides = [1, 1]} : vector<22x8xbf16> to vector<16x8xbf16>
    %10 = tpu.concatenate %3, %4, %5, %6, %7, %8, %9 in 1 : vector<16x8xbf16>, vector<16x8xbf16>, vector<16x8xbf16>, vector<16x8xbf16>, vector<16x8xbf16>, vector<16x8xbf16>, vector<16x8xbf16> -> vector<16x56xbf16>
    %cst = arith.constant dense<0.000000e+00> : vector<16x32xf32>
    %11 = tpu.matmul %10, %2, %cst {dimension_numbers = #tpu.dot_dimension_numbers<[1], [0], [0], [1], [0, 0, 1, 1], [], []>} : vector<16x56xbf16>, vector<56x32xbf16>, vector<16x32xf32> -> vector<16x32xf32>
    %c0_5 = arith.constant 0 : index
    %c0_6 = arith.constant 0 : index
    %12 = vector.load %arg4[%c0_5, %c0_6] : memref<1x32xf32, #tpu.memory_space<vmem>>, vector<1x32xf32>
    %13 = vector.broadcast %12 : vector<1x32xf32> to vector<16x32xf32>
    %14 = arith.addf %11, %13 : vector<16x32xf32>
    %15 = arith.truncf %14 : vector<16x32xf32> to vector<16x32xbf16>
    %c0_7 = arith.constant 0 : index
    %c0_8 = arith.constant 0 : index
    %c0_9 = arith.constant 0 : index
    %c0_10 = arith.constant 0 : index
    %16 = vector.load %arg5[%c0_7, %c0_8, %c0_9, %c0_10] : memref<1x1x16x32xbf16, #tpu.memory_space<vmem>>, vector<1x1x16x32xbf16>
    %17 = vector.shape_cast %16 : vector<1x1x16x32xbf16> to vector<16x32xbf16>
    %18 = vector.shape_cast %15 : vector<16x32xbf16> to vector<1x1x16x32xbf16>
    tpu.vector_store %arg5[%c0_7, %c0_8, %c0_9, %c0_10], %18 {strides = array<i32>} : memref<1x1x16x32xbf16, #tpu.memory_space<vmem>>, vector<1x1x16x32xbf16>,
    return
  }
  func.func @transform_0(%arg0: i32, %arg1: i32) -> (i32, i32, i32, i32) {
    %c0_i32 = arith.constant 0 : i32
    %c0_i32_0 = arith.constant 0 : i32
    %c0_i32_1 = arith.constant 0 : i32
    return %arg1, %arg0, %c0_i32, %c0_i32_0 : i32, i32, i32, i32
  }
  func.func @transform_1(%arg0: i32, %arg1: i32) -> (i32, i32) {
    %c0_i32 = arith.constant 0 : i32
    %c0_i32_0 = arith.constant 0 : i32
    %c0_i32_1 = arith.constant 0 : i32
    return %c0_i32, %c0_i32_0 : i32, i32
  }
  func.func @transform_2(%arg0: i32, %arg1: i32) -> (i32, i32) {
    %c0_i32 = arith.constant 0 : i32
    %c0_i32_0 = arith.constant 0 : i32
    %c0_i32_1 = arith.constant 0 : i32
    return %c0_i32, %c0_i32_0 : i32, i32
  }
  func.func @transform_3(%arg0: i32, %arg1: i32) -> (i32, i32, i32, i32) {
    %c0_i32 = arith.constant 0 : i32
    %c0_i32_0 = arith.constant 0 : i32
    %c0_i32_1 = arith.constant 0 : i32
    return %arg1, %arg0, %c0_i32, %c0_i32_0 : i32, i32, i32, i32
  }
}

</mosaic_0001>

<llo_original>
// kernel: tpu_custom_call.1
$region0: #{tpu_custom_call.1}
  #allocation0 [shape = 'u32[]', space=smem, size = 0x4, offset = 0x4, fixed_abs, tag = 'smem constant byte address 0x4 - core index']
  #allocation1 [shape = 'u32[144,128]{1,0:T(1,128)}', space=vmem, size = 0x12000, scoped, tag = 'internal scratch']
  %s0 = inlined_call_operand.hbm [shape: f32[8,128], index: 0, kind: input, shape index: {}]
  %s1 = inlined_call_operand.hbm [shape: f32[16,128], index: 1, kind: output, shape index: {}]
  %s2 = sld [smem:[#allocation0]]
  $region41: #{tpu_custom_call.1} parent=0
    _
  %s4 = ssub.s32 1, %s2
  %s5 = scalar_select 0, %s4, %s2
  $region1: #{tpu_custom_call.1} parent=0
    #allocation2 [shape = 'u8[4096]{0}', space=vmem, size = 0x1000, scoped, tag = 'input window, operand 0, single buffered']
    #allocation3 [shape = 's32[2]{0}', space=sflag, size = 0x8, scoped, tag = 'scoped memory for tpu_custom_call.1']
    #allocation4 [shape = 's32[2]{0}', space=sflag, size = 0x8, scoped, tag = 'scoped memory for tpu_custom_call.1']
    #allocation5 [shape = 'u8[8192]{0}', space=vmem, size = 0x2000, scoped, tag = 'output window, operand 0']
    %6 = vsyncpa [#allocation3], 0
    %7 = vsyncpa [#allocation4], 0
    %s8 = scalar_lea.sflag [#allocation4], 1
    %9 = vsyncpa %s8, 0
    loop: start=0, step=1, limit=4
    $region2: #{tpu_custom_call.1} parent=1 // loop_pre_header
      _
    $region3: #{tpu_custom_call.1} parent=1 // loop_header
      %s11 = sphi 0, %s15
      %p12 = scmp.ge.s32.totalorder %s11, 4
      %s19 = sphi 0, %s19
      %s21 = sphi 0, %s19
      %s22 = sphi 0, %s21
      %s36 = sphi 0, %s22
      %s42 = sphi 0, %s44
      %s45 = sphi 0, %s42
      %s46 = sphi 0, %s45
      %s62 = sphi 0, %s46
    $region4: #{tpu_custom_call.1} parent=1 // loop_header_branch
      %14 = sbr.rel (%p12) target = $region8
    $region5: #{tpu_custom_call.1} parent=1 // loop_body
      %s16 = ssub.s32 %s11, 1
      %s17 = ssub.s32 %s11, 2
      %s18 = sadd.s32 %s11, 1
      %s20 = sadd.s32 %s19, 1
      %p23 = scmp.eq.s32.totalorder %s11, 1
      %p24 = scmp.ne.s32.totalorder %s19, %s21
      %p25 = scmp.eq.s32.totalorder %s11, 0
      %p26 = por %p24, %p25
      %p27 = scmp.ne.s32.totalorder %s19, %s21
      %p28 = scmp.eq.s32.totalorder %s16, 1
      %p29 = por %p27, %p28
      %p30 = scmp.ne.s32.totalorder %s21, %s22
      %p31 = scmp.eq.s32.totalorder %s16, 0
      %p32 = por %p30, %p31
      %p33 = scmp.ne.s32.totalorder %s21, %s22
      %p34 = scmp.eq.s32.totalorder %s17, 1
      %p35 = por %p33, %p34
      %p37 = scmp.ne.s32.totalorder %s22, %s36
      %p38 = scmp.eq.s32.totalorder %s17, 0
      %p39 = por %p37, %p38
      %s40 = ssub.s32 %s11, %s18
      %p41 = scmp.eq.s32.totalorder %s40, 0
      %s43 = sadd.s32 %s42, 1
      %s44 = scalar_select %p41, %s42, %s43
      %p47 = pneg %p41
      %p48 = scmp.eq.s32.totalorder %s11, 1
      %p49 = por %p47, %p48
      %p50 = scmp.ne.s32.totalorder %s42, %s45
      %p51 = scmp.eq.s32.totalorder %s11, 0
      %p52 = por %p50, %p51
      %p53 = scmp.ne.s32.totalorder %s42, %s45
      %p54 = scmp.eq.s32.totalorder %s16, 1
      %p55 = por %p53, %p54
      %p56 = scmp.ne.s32.totalorder %s45, %s46
      %p57 = scmp.eq.s32.totalorder %s16, 0
      %p58 = por %p56, %p57
      %p59 = scmp.ne.s32.totalorder %s45, %s46
      %p60 = scmp.eq.s32.totalorder %s17, 1
      %p61 = por %p59, %p60
      %p63 = scmp.ne.s32.totalorder %s46, %s62
      %p64 = scmp.eq.s32.totalorder %s17, 0
      %p65 = por %p63, %p64
      %p66 = scmp.le.s32.totalorder 1, %s11
      %p67 = scmp.lt.s32.totalorder %s11, 3
      %p68 = pnand %p66, %p67
      %p69 = pneg %p68
      // Predicated region
      $region9: #{tpu_custom_call.1} parent=5 // pred_check
        _
      $region10: #{tpu_custom_call.1} parent=5 // pred_check_branch
        %71 = sbr.rel (%p68) target = $region12
      $region11: #{tpu_custom_call.1} parent=5 // pred_region
        %s72 = ssub.s32 %s11, 1
        // Predicated region
        $region13: #{tpu_custom_call.1} parent=11 // pred_check
          %p73 = pneg %p32
        $region14: #{tpu_custom_call.1} parent=11 // pred_check_branch
          %75 = sbr.rel (%p73) target = $region16
        $region15: #{tpu_custom_call.1} parent=11 // pred_region
          %s77 = ssub.s32 128, 128
          %78 = vsyncadd [#allocation3], %s77
          %s80 = sshll.u32 [#allocation2], 4
          %s81 = int_to_ptr.vmem [resolvable:$true] %s80
          %83 = dma.hbm_to_vmem [thread:$0]  %s0, 128, %s81, [#allocation3]
        $region16: #{tpu_custom_call.1} parent=11 // pred_fallthru
          _
      $region12: #{tpu_custom_call.1} parent=5 // pred_fallthru
        _
      %p84 = scmp.lt.s32.totalorder %s11, 2
      // Predicated region
      $region17: #{tpu_custom_call.1} parent=5 // pred_check
        %p85 = pneg %p84
      $region18: #{tpu_custom_call.1} parent=5 // pred_check_branch
        %87 = sbr.rel (%p85) target = $region20
      $region19: #{tpu_custom_call.1} parent=5 // pred_region
        _
      $region20: #{tpu_custom_call.1} parent=5 // pred_fallthru
        _
      %p88 = scmp.le.s32.totalorder 1, %s11
      %p89 = scmp.lt.s32.totalorder %s11, 3
      %p90 = pnand %p88, %p89
      %p91 = pneg %p90
      // Predicated region
      $region21: #{tpu_custom_call.1} parent=5 // pred_check
        _
      $region22: #{tpu_custom_call.1} parent=5 // pred_check_branch
        %93 = sbr.rel (%p90) target = $region24
      $region23: #{tpu_custom_call.1} parent=5 // pred_region
        %s94 = ssub.s32 %s11, 1
        // Predicated region
        $region25: #{tpu_custom_call.1} parent=23 // pred_check
          %p95 = pneg %p32
        $region26: #{tpu_custom_call.1} parent=23 // pred_check_branch
          %97 = sbr.rel (%p95) target = $region28
        $region27: #{tpu_custom_call.1} parent=23 // pred_region
          %98 = dma.done [#allocation3], 128
        $region28: #{tpu_custom_call.1} parent=23 // pred_fallthru
          _
        %p99 = pneg %p32
        %p100 = pneg %p29
        %p101 = pneg %p58
        %p102 = pneg %p55
        %s103 = sand.u32 %s45, 1
        %s104 = scalar_lea.sflag [#allocation4], %s103
        %s105 = sand.u32 %s45, 1
        %s106 = smul.addr %s105, 8
        %s107 = scalar_lea.vmem [#allocation5], %s106
        %v108 = vld [vmem:[#allocation2] sm:$0xff]
        %v109 = vadd.f32 %v108, 1.0
        %110 = vst [vmem:[%s107] sm:$0xff] %v109
        %s111 = sand.u32 %s45, 1
        %s112 = scalar_lea.sflag [#allocation4], %s111
        %s113 = sand.u32 %s45, 1
        %s114 = smul.addr %s113, 8
        %s115 = scalar_lea.vmem [#allocation5], %s114
        // Predicated region
        $region29: #{tpu_custom_call.1} parent=23 // pred_check
          %p116 = pneg %p55
        $region30: #{tpu_custom_call.1} parent=23 // pred_check_branch
          %118 = sbr.rel (%p116) target = $region32
        $region31: #{tpu_custom_call.1} parent=23 // pred_region
          %s120 = ssub.s32 128, 128
          %121 = vsyncadd %s112, %s120
          %s122 = smul.addr %s16, 128
          %s123 = scalar_lea.hbm %s1, %s122
          %s125 = sshll.u32 %s115, 4
          %s126 = int_to_ptr.vmem [resolvable:$true] %s125
          %128 = dma.vmem_to_hbm [thread:$0]  %s126, 128, %s123, %s112
        $region32: #{tpu_custom_call.1} parent=23 // pred_fallthru
          _
      $region24: #{tpu_custom_call.1} parent=5 // pred_fallthru
        _
      %p129 = scmp.le.s32.totalorder 2, %s11
      // Predicated region
      $region33: #{tpu_custom_call.1} parent=5 // pred_check
        %p130 = pneg %p129
      $region34: #{tpu_custom_call.1} parent=5 // pred_check_branch
        %132 = sbr.rel (%p130) target = $region36
      $region35: #{tpu_custom_call.1} parent=5 // pred_region
        %s133 = ssub.s32 %s11, 2
        // Predicated region
        $region37: #{tpu_custom_call.1} parent=35 // pred_check
          %p134 = pneg %p61
        $region38: #{tpu_custom_call.1} parent=35 // pred_check_branch
          %136 = sbr.rel (%p134) target = $region40
        $region39: #{tpu_custom_call.1} parent=35 // pred_region
          %s137 = sand.u32 %s46, 1
          %s138 = scalar_lea.sflag [#allocation4], %s137
          %s139 = sand.u32 %s46, 1
          %s140 = smul.addr %s139, 8
          %s141 = scalar_lea.vmem [#allocation5], %s140
          %142 = dma.done %s138, 128
        $region40: #{tpu_custom_call.1} parent=35 // pred_fallthru
          _
      $region36: #{tpu_custom_call.1} parent=5 // pred_fallthru
        _
    $region6: #{tpu_custom_call.1} parent=1 // loop_footer
      %s15 = sadd.s32 1, %s11
    $region7: #{tpu_custom_call.1} parent=1 // loop_footer_branch
      %10 = sbr.rel target = $region3
    $region8: #{tpu_custom_call.1} parent=1 // loop_exit
      _
    %143 = vsyncpa [#allocation3], 1
    %s144 = scalar_lea.sflag [#allocation3], 1
    %145 = vsyncpa %s144, 1
    %146 = vsyncpa [#allocation4], 1
    %s147 = scalar_lea.sflag [#allocation4], 1
    %148 = vsyncpa %s147, 1

// kernel: fused_conv1d.1
$region0: #{fused_conv1d.1}
  #allocation0 [shape = 'u32[]', space=smem, size = 0x4, offset = 0x4, fixed_abs, tag = 'smem constant byte address 0x4 - core index']
  #allocation1 [shape = 'u32[144,128]{1,0:T(1,128)}', space=vmem, size = 0x12000, scoped, tag = 'internal scratch']
  %s0 = inlined_call_operand.vmem [shape: bf16[2,1,22,8], index: 0, kind: input, shape index: {}]
  %s1 = inlined_call_operand.vmem [shape: bf16[56,32], index: 1, kind: input, shape index: {}]
  %s2 = inlined_call_operand.vmem [shape: f32[1,32], index: 2, kind: input, shape index: {}]
  %s3 = inlined_call_operand.hbm [shape: bf16[2,1,16,32], index: 3, kind: output, shape index: {}]
  %s4 = sld [smem:[#allocation0]]
  $region45: #{fused_conv1d.1} parent=0
    _
  %s6 = ssub.s32 1, %s4
  %s7 = scalar_select 0, %s6, %s4
  $region1: #{fused_conv1d.1} parent=0
    #allocation2 [shape = 'u8[8192]{0}', space=vmem, size = 0x2000, scoped, tag = 'output window, operand 0']
    #allocation3 [shape = 's32[2]{0}', space=sflag, size = 0x8, scoped, tag = 'scoped memory for fused_conv1d.1']
    %8 = vsyncpa [#allocation3], 0
    %s9 = scalar_lea.sflag [#allocation3], 1
    %10 = vsyncpa %s9, 0
    loop: start=0, step=1, limit=4
    $region2: #{fused_conv1d.1} parent=1 // loop_pre_header
      _
    $region3: #{fused_conv1d.1} parent=1 // loop_header
      %s12 = sphi 0, %s16
      %p13 = scmp.ge.s32.totalorder %s12, 4
      %s19 = sphi 0, %s31
      %s20 = sphi 0, %s27
      %s21 = sphi 0, %s19
      %s22 = sphi 0, %s20
      %s23 = sphi 0, %s21
      %s24 = sphi 0, %s22
      %s36 = sphi 0, %s38
      %s39 = sphi 0, %s36
      %s40 = sphi 0, %s39
      %s56 = sphi 0, %s40
      %s60 = sphi 0, %s60
      %s62 = sphi 0, %s60
      %s63 = sphi 0, %s62
      %s77 = sphi 0, %s63
      %s81 = sphi 0, %s81
      %s83 = sphi 0, %s81
      %s84 = sphi 0, %s83
      %s98 = sphi 0, %s84
      %s106 = sphi 0, %s108
      %s109 = sphi 0, %s106
      %s110 = sphi 0, %s109
      %s126 = sphi 0, %s110
    $region4: #{fused_conv1d.1} parent=1 // loop_header_branch
      %15 = sbr.rel (%p13) target = $region8
    $region5: #{fused_conv1d.1} parent=1 // loop_body
      %s17 = ssub.s32 %s12, 1
      %s18 = ssub.s32 %s12, 2
      %s25 = sadd.s32 1, %s20
      %p26 = scmp.ge.s32.totalorder %s25, 2
      %s27 = scalar_select %p26, 0, %s25
      %s28 = sadd.s32 1, %s19
      %s29 = scalar_select %p26, %s28, %s19
      %p30 = scmp.ge.s32.totalorder %s29, 1
      %s31 = scalar_select %p30, 0, %s29
      %s32 = ssub.s32 %s20, %s27
      %s33 = ssub.s32 %s19, %s31
      %s34 = sor.u32 %s32, %s33
      %p35 = scmp.eq.s32.totalorder %s34, 0
      %s37 = sadd.s32 %s36, 1
      %s38 = scalar_select %p35, %s36, %s37
      %p41 = pneg %p35
      %p42 = scmp.eq.s32.totalorder %s12, 1
      %p43 = por %p41, %p42
      %p44 = scmp.ne.s32.totalorder %s36, %s39
      %p45 = scmp.eq.s32.totalorder %s12, 0
      %p46 = por %p44, %p45
      %p47 = scmp.ne.s32.totalorder %s36, %s39
      %p48 = scmp.eq.s32.totalorder %s17, 1
      %p49 = por %p47, %p48
      %p50 = scmp.ne.s32.totalorder %s39, %s40
      %p51 = scmp.eq.s32.totalorder %s17, 0
      %p52 = por %p50, %p51
      %p53 = scmp.ne.s32.totalorder %s39, %s40
      %p54 = scmp.eq.s32.totalorder %s18, 1
      %p55 = por %p53, %p54
      %p57 = scmp.ne.s32.totalorder %s40, %s56
      %p58 = scmp.eq.s32.totalorder %s18, 0
      %p59 = por %p57, %p58
      %s61 = sadd.s32 %s60, 1
      %p64 = scmp.eq.s32.totalorder %s12, 1
      %p65 = scmp.ne.s32.totalorder %s60, %s62
      %p66 = scmp.eq.s32.totalorder %s12, 0
      %p67 = por %p65, %p66
      %p68 = scmp.ne.s32.totalorder %s60, %s62
      %p69 = scmp.eq.s32.totalorder %s17, 1
      %p70 = por %p68, %p69
      %p71 = scmp.ne.s32.totalorder %s62, %s63
      %p72 = scmp.eq.s32.totalorder %s17, 0
      %p73 = por %p71, %p72
      %p74 = scmp.ne.s32.totalorder %s62, %s63
      %p75 = scmp.eq.s32.totalorder %s18, 1
      %p76 = por %p74, %p75
      %p78 = scmp.ne.s32.totalorder %s63, %s77
      %p79 = scmp.eq.s32.totalorder %s18, 0
      %p80 = por %p78, %p79
      %s82 = sadd.s32 %s81, 1
      %p85 = scmp.eq.s32.totalorder %s12, 1
      %p86 = scmp.ne.s32.totalorder %s81, %s83
      %p87 = scmp.eq.s32.totalorder %s12, 0
      %p88 = por %p86, %p87
      %p89 = scmp.ne.s32.totalorder %s81, %s83
      %p90 = scmp.eq.s32.totalorder %s17, 1
      %p91 = por %p89, %p90
      %p92 = scmp.ne.s32.totalorder %s83, %s84
      %p93 = scmp.eq.s32.totalorder %s17, 0
      %p94 = por %p92, %p93
      %p95 = scmp.ne.s32.totalorder %s83, %s84
      %p96 = scmp.eq.s32.totalorder %s18, 1
      %p97 = por %p95, %p96
      %p99 = scmp.ne.s32.totalorder %s84, %s98
      %p100 = scmp.eq.s32.totalorder %s18, 0
      %p101 = por %p99, %p100
      %s102 = ssub.s32 %s20, %s27
      %s103 = ssub.s32 %s19, %s31
      %s104 = sor.u32 %s102, %s103
      %p105 = scmp.eq.s32.totalorder %s104, 0
      %s107 = sadd.s32 %s106, 1
      %s108 = scalar_select %p105, %s106, %s107
      %p111 = pneg %p105
      %p112 = scmp.eq.s32.totalorder %s12, 1
      %p113 = por %p111, %p112
      %p114 = scmp.ne.s32.totalorder %s106, %s109
      %p115 = scmp.eq.s32.totalorder %s12, 0
      %p116 = por %p114, %p115
      %p117 = scmp.ne.s32.totalorder %s106, %s109
      %p118 = scmp.eq.s32.totalorder %s17, 1
      %p119 = por %p117, %p118
      %p120 = scmp.ne.s32.totalorder %s109, %s110
      %p121 = scmp.eq.s32.totalorder %s17, 0
      %p122 = por %p120, %p121
      %p123 = scmp.ne.s32.totalorder %s109, %s110
      %p124 = scmp.eq.s32.totalorder %s18, 1
      %p125 = por %p123, %p124
      %p127 = scmp.ne.s32.totalorder %s110, %s126
      %p128 = scmp.eq.s32.totalorder %s18, 0
      %p129 = por %p127, %p128
      %p130 = scmp.le.s32.totalorder 1, %s12
      %p131 = scmp.lt.s32.totalorder %s12, 3
      %p132 = pnand %p130, %p131
      %p133 = pneg %p132
      // Predicated region
      $region9: #{fused_conv1d.1} parent=5 // pred_check
        _
      $region10: #{fused_conv1d.1} parent=5 // pred_check_branch
        %135 = sbr.rel (%p132) target = $region12
      $region11: #{fused_conv1d.1} parent=5 // pred_region
        %s136 = ssub.s32 %s12, 1
        // Predicated region
        $region13: #{fused_conv1d.1} parent=11 // pred_check
          %p137 = pneg %p73
        $region14: #{fused_conv1d.1} parent=11 // pred_check_branch
          %139 = sbr.rel (%p137) target = $region16
        $region15: #{fused_conv1d.1} parent=11 // pred_region
          _
        $region16: #{fused_conv1d.1} parent=11 // pred_fallthru
          _
        // Predicated region
        $region17: #{fused_conv1d.1} parent=11 // pred_check
          %p140 = pneg %p94
        $region18: #{fused_conv1d.1} parent=11 // pred_check_branch
          %142 = sbr.rel (%p140) target = $region20
        $region19: #{fused_conv1d.1} parent=11 // pred_region
          _
        $region20: #{fused_conv1d.1} parent=11 // pred_fallthru
          _
      $region12: #{fused_conv1d.1} parent=5 // pred_fallthru
        _
      %p143 = scmp.lt.s32.totalorder %s12, 2
      // Predicated region
      $region21: #{fused_conv1d.1} parent=5 // pred_check
        %p144 = pneg %p143
      $region22: #{fused_conv1d.1} parent=5 // pred_check_branch
        %146 = sbr.rel (%p144) target = $region24
      $region23: #{fused_conv1d.1} parent=5 // pred_region
        // Predicated region
        $region25: #{fused_conv1d.1} parent=23 // pred_check
          %p147 = pneg %p46
        $region26: #{fused_conv1d.1} parent=23 // pred_check_branch
          %149 = sbr.rel (%p147) target = $region28
        $region27: #{fused_conv1d.1} parent=23 // pred_region
          %p150 = scmp.lt.s32.totalorder %s20, 1
          %s151 = scalar_select %p150, %s20, 1
          %p152 = scmp.lt.s32.totalorder %s19, 0
          %s153 = scalar_select %p152, %s19, 0
          %s154 = smul.addr %s153, 3
          %s155 = smul.addr %s151, 3
          %s156 = sadd.s32 %s154, %s155
          %s157 = smul.addr %s156, 4
          %s158 = scalar_lea.vmem %s0, %s157
        $region28: #{fused_conv1d.1} parent=23 // pred_fallthru
          _
      $region24: #{fused_conv1d.1} parent=5 // pred_fallthru
        _
      %p159 = scmp.le.s32.totalorder 1, %s12
      %p160 = scmp.lt.s32.totalorder %s12, 3
      %p161 = pnand %p159, %p160
      %p162 = pneg %p161
      // Predicated region
      $region29: #{fused_conv1d.1} parent=5 // pred_check
        _
      $region30: #{fused_conv1d.1} parent=5 // pred_check_branch
        %164 = sbr.rel (%p161) target = $region32
      $region31: #{fused_conv1d.1} parent=5 // pred_region
        %s165 = ssub.s32 %s12, 1
        %p166 = scmp.lt.s32.totalorder %s22, 1
        %s167 = scalar_select %p166, %s22, 1
        %p168 = scmp.lt.s32.totalorder %s21, 0
        %s169 = scalar_select %p168, %s21, 0
        %s170 = smul.addr %s169, 3
        %s171 = smul.addr %s167, 3
        %s172 = sadd.s32 %s170, %s171
        %s173 = smul.addr %s172, 4
        %s174 = scalar_lea.vmem %s0, %s173
        %p175 = pneg %p52
        %p176 = pneg %p49
        %p177 = pneg %p73
        %p178 = pneg %p70
        %p179 = pneg %p94
        %p180 = pneg %p91
        %p181 = pneg %p122
        %p182 = pneg %p119
        %s183 = sand.u32 %s109, 1
        %s184 = scalar_lea.sflag [#allocation3], %s183
        %s185 = sand.u32 %s109, 1
        %s186 = smul.addr %s185, 8
        %s187 = scalar_lea.vmem [#allocation2], %s186
        %p188 = scmp.lt.s32.totalorder %s22, 1
        %s189 = scalar_select %p188, %s22, 1
        %p190 = scmp.lt.s32.totalorder %s21, 0
        %s191 = scalar_select %p190, %s21, 0
        %s192 = smul.addr %s191, 3
        %s193 = smul.addr %s189, 3
        %s194 = sadd.s32 %s192, %s193
        %s195 = smul.addr %s194, 4
        %s196 = scalar_lea.vmem %s0, %s195
        %v198 = vld [vmem:[%s196] sm:$0xf]
        %v199 = vld [vmem:[%s196 + $0x4] sm:$0xf]
        %v200 = vld [vmem:[%s196 + $0x8] sm:$0x7]
        %v201 = vld [vmem:[%s1] sm:$0xf]
        %v202 = vld [vmem:[%s1 + $0x4] sm:$0xf]
        %v203 = vld [vmem:[%s1 + $0x8] sm:$0xf]
        %v204 = vld [vmem:[%s1 + $0xc] sm:$0xf]
        %v205 = vld [vmem:[%s1 + $0x10] sm:$0xf]
        %v206 = vld [vmem:[%s1 + $0x14] sm:$0xf]
        %v207 = vld [vmem:[%s1 + $0x18] sm:$0xf]
        %v210 = vunpack.c.l.b16 %v198
        %v211 = vunpack.c.l.b16 %v199
        %v212 = vpack.c.b16 %v211, %v210
        %v214 = vunpack.c.l.b16 %v200
        %v215 = vpack.c.b16 %v214, %v214
        %vm216 = vsmask.f32 7424
        %v218 = vshrl.u32 %v212, 16
        %v220 = vshll.u32 %v212, 16
        %v222 = vrot.slane %v220, 1
        %v223 = vor.u32 %v218, %v222
        %v225 = vshll.u32 %v215, 16
        %v227 = vrot.slane %v225, 1
        %v228 = vsel %vm216, %v223, %v227
        %229 = vrot.lane.b32.xlu0 %v228, 8
        %v230 = vpop.permute.xlu0 %229
        %vm231 = vcmask 1046528
        %v232 = vrot.slane %v212, 1
        %v233 = vrot.slane %v215, 1
        %v234 = vsel %vm231, %v232, %v233
        %235 = vrot.lane.b32.xlu0 %v234, 16
        %v236 = vpop.permute.xlu0 %235
        %vm237 = vsmask.f32 6400
        %v238 = vrot.slane %v218, 1
        %v239 = vrot.slane %v220, 2
        %v240 = vor.u32 %v238, %v239
        %v241 = vshrl.u32 %v215, 16
        %v243 = vrot.slane %v241, 1
        %v244 = vrot.slane %v225, 2
        %v245 = vor.u32 %v243, %v244
        %v246 = vsel %vm237, %v240, %v245
        %247 = vrot.lane.b32.xlu0 %v246, 24
        %v248 = vpop.permute.xlu0 %247
        %vm249 = vcmask 1045504
        %v250 = vrot.slane %v212, 2
        %v251 = vrot.slane %v215, 2
        %v252 = vsel %vm249, %v250, %v251
        %253 = vrot.lane.b32.xlu0 %v252, 32
        %v254 = vpop.permute.xlu0 %253
        %vm255 = vsmask.f32 5376
        %v256 = vrot.slane %v218, 2
        %v257 = vrot.slane %v220, 3
        %v258 = vor.u32 %v256, %v257
        %v259 = vrot.slane %v241, 2
        %v260 = vrot.slane %v225, 3
        %v261 = vor.u32 %v259, %v260
        %v262 = vsel %vm255, %v258, %v261
        %263 = vrot.lane.b32.xlu0 %v262, 40
        %v264 = vpop.permute.xlu0 %263
        %vm265 = vcmask 1044480
        %v266 = vrot.slane %v212, 3
        %v267 = vrot.slane %v215, 3
        %v268 = vsel %vm265, %v266, %v267
        %269 = vrot.lane.b32.xlu0 %v268, 48
        %v270 = vpop.permute.xlu0 %269
        %vm271 = vcmask 64512
        %v273 = vsel %vm271, %v212, %v230
        %vm274 = vcmask 130048
        %v276 = vsel %vm274, %v273, %v236
        %vm277 = vcmask 195584
        %v279 = vsel %vm277, %v276, %v248
        %vm280 = vcmask 261120
        %v282 = vsel %vm280, %v279, %v254
        %vm283 = vcmask 326656
        %v285 = vsel %vm283, %v282, %v264
        %vm286 = vcmask 392192
        %v288 = vsel %vm286, %v285, %v270
        %v289 = vld [vmem:[%s2] sm:$0x1]
        %v291 = vlaneseq
        %v292 = vshrl.u32 %v291, 7
        %v293 = vsub.s32 0, %v292
        %v294 = vrot.slane %v289, %v293
        %v303 = vunpack.c.l.b16 %v201
        %v304 = vunpack.c.l.b16 %v202
        %v305 = vunpack.c.l.b16 %v203
        %v306 = vunpack.c.l.b16 %v204
        %v307 = vunpack.c.l.b16 %v205
        %v308 = vunpack.c.l.b16 %v206
        %v309 = vunpack.c.l.b16 %v207
        %v310 = vpack.c.b16 %v304, %v303
        %v311 = vpack.c.b16 %v306, %v305
        %v312 = vpack.c.b16 %v308, %v307
        %v313 = vpack.c.b16 %v309, %v309
        %vm317 = vcmask 457728
        %v318 = vsel %vm317, %v288, 0
        %vm320 = vcmask 1043456
        %v322 = vsel %vm320, %v313, 0
        %324 = vmatprep.subr.bf16.mxu0 0
        %325 = vmatpush1.bf16.msra.mxu0 %v310
        %326 = vmatprep.subr.bf16.mxu0 0
        %327 = vmatpush1.bf16.msra.mxu0 %v311
        %328 = vmatprep.subr.bf16.mxu0 0
        %329 = vmatpush1.bf16.msra.mxu0 %v312
        %330 = vmatprep.subr.bf16.mxu0 0
        %331 = vmatpush1.bf16.msra.mxu0 %v322
        %332 = vmatprep.subr.bf16.mxu0 0
        %333 = vmatpush1.bf16.msra.mxu0 0
        %334 = vmatprep.subr.bf16.mxu0 0
        %335 = vmatpush1.bf16.msra.mxu0 0
        %336 = vmatprep.subr.bf16.mxu0 0
        %337 = vmatpush1.bf16.msra.mxu0 0
        %338 = vmatprep.subr.bf16.mxu0 0
        %339 = vmatpush1.bf16.msra.mxu0 0
        %340 = vmatprep.subr.bf16.mxu0 0
        %341 = vmatpush1.bf16.msra.mxu0 0
        %342 = vmatprep.subr.bf16.mxu0 0
        %343 = vmatpush1.bf16.msra.mxu0 0
        %344 = vmatprep.subr.bf16.mxu0 0
        %345 = vmatpush1.bf16.msra.mxu0 0
        %346 = vmatprep.subr.bf16.mxu0 0
        %347 = vmatpush1.bf16.msra.mxu0 0
        %348 = vmatprep.subr.bf16.mxu0 0
        %349 = vmatpush1.bf16.msra.mxu0 0
        %350 = vmatprep.subr.bf16.mxu0 0
        %351 = vmatpush1.bf16.msra.mxu0 0
        %352 = vmatprep.subr.bf16.mxu0 0
        %353 = vmatpush1.bf16.msra.mxu0 0
        %354 = vmatprep.subr.bf16.mxu0 0
        %355 = vmatpush1.bf16.msra.mxu0 0
        %356 = vmatprep.mubr.bf16.mxu0 0
        %357 = vmatmul.mubr.bf16.gmra.mrb[0].mxu0 %v318
        %v358 = vpop.f32.mrb[0].mxu0
        %v359 = vadd.f32 %v294, %v358
        %v360 = vpop.f32.mrb[0].mxu0
        %v361 = vpop.f32.mrb[0].mxu0
        %v362 = vadd.f32 %v294, %v361
        %v363 = vpop.f32.mrb[0].mxu0
        %364 = vdwg.mxu0
        %v365 = vpack.c.bf16 %v362, %v359
        %v367 = vunpack.c.l.b16 %v365
        %v368 = vunpack.c.h.b16 %v365
        %v369 = vpack.c.b16 %v367, %v367
        %v370 = vpack.c.b16 %v368, %v368
        %vm373 = vcmask 257024
        %374 = vst.msk [vmem:[%s187] sm:$0xf] %vm373, %v369
        %375 = vst.msk [vmem:[%s187 + $0x4] sm:$0xf] %vm373, %v370
        %s376 = sand.u32 %s109, 1
        %s377 = scalar_lea.sflag [#allocation3], %s376
        %s378 = sand.u32 %s109, 1
        %s379 = smul.addr %s378, 8
        %s380 = scalar_lea.vmem [#allocation2], %s379
        // Predicated region
        $region33: #{fused_conv1d.1} parent=31 // pred_check
          %p381 = pneg %p119
        $region34: #{fused_conv1d.1} parent=31 // pred_check_branch
          %383 = sbr.rel (%p381) target = $region36
        $region35: #{fused_conv1d.1} parent=31 // pred_region
          %s385 = ssub.s32 128, 128
          %386 = vsyncadd %s377, %s385
          %s387 = smul.addr %s21, 2
          %s388 = smul.addr %s22, 2
          %s389 = sadd.s32 %s387, %s388
          %s390 = smul.addr %s389, 64
          %s391 = scalar_lea.hbm %s3, %s390
          %s392 = sshll.u32 %s380, 4
          %s393 = int_to_ptr.vmem [resolvable:$true] %s392
          %398 = dma.vmem_to_hbm [thread:$0]  %s393, 128, %s391, %s377, 64, 64, 4
        $region36: #{fused_conv1d.1} parent=31 // pred_fallthru
          _
      $region32: #{fused_conv1d.1} parent=5 // pred_fallthru
        _
      %p399 = scmp.le.s32.totalorder 2, %s12
      // Predicated region
      $region37: #{fused_conv1d.1} parent=5 // pred_check
        %p400 = pneg %p399
      $region38: #{fused_conv1d.1} parent=5 // pred_check_branch
        %402 = sbr.rel (%p400) target = $region40
      $region39: #{fused_conv1d.1} parent=5 // pred_region
        %s403 = ssub.s32 %s12, 2
        // Predicated region
        $region41: #{fused_conv1d.1} parent=39 // pred_check
          %p404 = pneg %p125
        $region42: #{fused_conv1d.1} parent=39 // pred_check_branch
          %406 = sbr.rel (%p404) target = $region44
        $region43: #{fused_conv1d.1} parent=39 // pred_region
          %s407 = sand.u32 %s110, 1
          %s408 = scalar_lea.sflag [#allocation3], %s407
          %s409 = sand.u32 %s110, 1
          %s410 = smul.addr %s409, 8
          %s411 = scalar_lea.vmem [#allocation2], %s410
          %412 = dma.done %s408, 128
        $region44: #{fused_conv1d.1} parent=39 // pred_fallthru
          _
      $region40: #{fused_conv1d.1} parent=5 // pred_fallthru
        _
    $region6: #{fused_conv1d.1} parent=1 // loop_footer
      %s16 = sadd.s32 1, %s12
    $region7: #{fused_conv1d.1} parent=1 // loop_footer_branch
      %11 = sbr.rel target = $region3
    $region8: #{fused_conv1d.1} parent=1 // loop_exit
      _
    %413 = vsyncpa [#allocation3], 1
    %s414 = scalar_lea.sflag [#allocation3], 1
    %415 = vsyncpa %s414, 1

</llo_original>
